<compile_context>
chip_gen: v6e
topology: v6e:2x2x1
jax: 0.10.0
libtpu: 0.0.40
codegen_flags: <defaults>
</compile_context>

<pallas_src>
import functools

import jax
import jax.numpy as jnp
from jax.experimental import pallas as pl
from jax.experimental.pallas import tpu as pltpu

_INV_SQRT2 = 0.7071067811865476
_SQRT_2_OVER_PI = 0.7978845608028654


def _gelu(x, approximate):
    if approximate:
        # tanh-approximate GELU: the transcendental runs on the EUP slot.
        inner = _SQRT_2_OVER_PI * (x + 0.044715 * (x * x * x))
        return 0.5 * x * (1.0 + jnp.tanh(inner))
    # Exact erf-based GELU (PyTorch nn.GELU() default) -- VPU polynomial.
    return 0.5 * x * (1.0 + jax.lax.erf(x * _INV_SQRT2))


def metanet_kernel(x_ref, w1_ref, b1_ref, w2_ref, b2_ref, w3t_ref, b3_ref,
                   o_ref, *, approximate):
    # linear1 + GELU  (dropout = identity at inference)
    x = x_ref[...].astype(w1_ref.dtype)                                 # (tb, dim)
    h1 = jnp.dot(x, w1_ref[...], preferred_element_type=jnp.float32)
    h1 = _gelu(h1 + b1_ref[...], approximate)                           # (tb, 256) f32

    # linear2 + GELU
    h2 = jnp.dot(h1.astype(w2_ref.dtype), w2_ref[...],
                 preferred_element_type=jnp.float32)
    h2 = _gelu(h2 + b2_ref[...], approximate)                           # (tb, 128) f32

    # linear3, lane-dense: contract the 128-feature dim against W3^T so the
    # result is a (1, tb) row (batch on lanes) -> unmasked lane-dense store.
    out = jax.lax.dot_general(
        w3t_ref[...], h2.astype(w3t_ref.dtype),
        dimension_numbers=(((1,), (1,)), ((), ())),
        preferred_element_type=jnp.float32,
    )                                                                    # (1, tb)
    o_ref[...] = (out + b3_ref[0]).astype(o_ref.dtype)


def _round_up(n, m):
    return ((n + m - 1) // m) * m


@functools.partial(jax.jit,
                   static_argnames=("block_b", "approximate_gelu", "matmul_dtype"))
def metanet_forward(x, w1, b1, w2, b2, w3, b3, *, block_b=2048,
                    approximate_gelu=True, matmul_dtype=jnp.float32):
    B, dim = x.shape
    h1f, h2f = w1.shape[1], w2.shape[1]

    # Tile choice:
    #  * B <= 256: one block of exactly B rows (block == full array dims is a
    #    legal tile for any B, no padding needed).
    #  * B  > 256: >= 2 blocks so v7x's two TensorCores both get work; the tile
    #    is 128-aligned so the lane-dense output block stays a multiple of 128
    #    (unmasked stores) and the x tile's sublane dim is 8-aligned.  The
    #    trailing block may be partial: OOB input rows compute on undefined
    #    data, but the matching output lanes are write-dropped.
    if B <= 256:
        tb = B
    else:
        tb = max(128, min(_round_up(block_b, 128), _round_up(pl.cdiv(B, 2), 128)))
    nb = pl.cdiv(B, tb)

    w1c = w1.astype(matmul_dtype)
    w2c = w2.astype(matmul_dtype)
    w3t = jnp.transpose(w3).astype(matmul_dtype)          # (1, 128)
    b1r = jnp.reshape(b1, (1, h1f)).astype(jnp.float32)
    b2r = jnp.reshape(b2, (1, h2f)).astype(jnp.float32)
    b3r = jnp.reshape(b3, (1,)).astype(jnp.float32)       # SMEM scalar

    kernel = functools.partial(metanet_kernel, approximate=approximate_gelu)

    out = pl.pallas_call(
        kernel,
        out_shape=jax.ShapeDtypeStruct((1, B), jnp.float32),
        grid_spec=pltpu.PrefetchScalarGridSpec(
            num_scalar_prefetch=0,
            grid=(nb,),
            in_specs=[
                pl.BlockSpec((tb, dim), lambda i: (i, 0)),          # x tile
                pl.BlockSpec((dim, h1f), lambda i: (0, 0)),         # W1, resident
                pl.BlockSpec((1, h1f), lambda i: (0, 0)),           # b1, resident
                pl.BlockSpec((h1f, h2f), lambda i: (0, 0)),         # W2, resident
                pl.BlockSpec((1, h2f), lambda i: (0, 0)),           # b2, resident
                pl.BlockSpec((1, h2f), lambda i: (0, 0)),           # W3^T, resident
                pl.BlockSpec(memory_space=pltpu.MemorySpace.SMEM),  # b3 scalar
            ],
            out_specs=pl.BlockSpec((1, tb), lambda i: (0, i)),      # lane-dense row
        ),
        compiler_params=pltpu.CompilerParams(
            dimension_semantics=("parallel",),    # megacore / v7x 2-TC sharding
            vmem_limit_bytes=32 * 1024 * 1024,    # ~6 MiB used at tb=2048
        ),
    )(x, w1c, b1r, w2c, b2r, w3t, b3r)

    return jnp.reshape(out, (B, 1))


def init_params(key, dim=13):
    """Deterministic PyTorch-style (uniform +-1/sqrt(fan_in)) init."""
    ks = jax.random.split(key, 6)

    def lin(kw, kb, fan_in, fan_out):
        bound = 1.0 / jnp.sqrt(jnp.float32(fan_in))
        w = jax.random.uniform(kw, (fan_in, fan_out), jnp.float32, -bound, bound)
        b = jax.random.uniform(kb, (1, fan_out), jnp.float32, -bound, bound)
        return w, b

    w1, b1 = lin(ks[0], ks[1], dim, 256)
    w2, b2 = lin(ks[2], ks[3], 256, 128)
    w3, b3 = lin(ks[4], ks[5], 128, 1)
    return w1, b1, w2, b2, w3, b3


def metanet_ref(x, w1, b1, w2, b2, w3, b3, *, approximate):
    hp = jax.lax.Precision.HIGHEST   # match the kernel's f32 MXU accuracy
    h = jax.nn.gelu(jnp.dot(x, w1, precision=hp) + b1, approximate=approximate)
    h = jax.nn.gelu(jnp.dot(h, w2, precision=hp) + b2, approximate=approximate)
    return jnp.dot(h, w3, precision=hp) + b3


if __name__ == "__main__":
    key = jax.random.PRNGKey(0)
    k_x, k_p = jax.random.split(key)

    dim = 13
    params = init_params(k_p, dim=dim)

    # --- small batch: single-block path --------------------------------------
    x_small = jax.random.normal(k_x, (16, dim), jnp.float32)
    ref_exact = metanet_ref(x_small, *params, approximate=False)
    ref_tanh = metanet_ref(x_small, *params, approximate=True)

    out_tanh = jax.block_until_ready(metanet_forward(x_small, *params))
    assert out_tanh.shape == (16, 1), out_tanh.shape
    assert jnp.allclose(out_tanh, ref_tanh, atol=1e-4, rtol=1e-4)
    # tanh-GELU output stays close to the exact-GELU (PyTorch) reference.
    assert float(jnp.max(jnp.abs(out_tanh - ref_exact))) < 5e-3

    out_exact = jax.block_until_ready(
        metanet_forward(x_small, *params, approximate_gelu=False))
    assert out_exact.shape == (16, 1), out_exact.shape
    assert jnp.allclose(out_exact, ref_exact, atol=1e-4, rtol=1e-4)

    # --- larger batch: multi-block path (2 blocks, partial trailing block) ----
    x_big = jax.random.normal(k_x, (320, dim), jnp.float32)
    ref_big = metanet_ref(x_big, *params, approximate=True)
    out_big = jax.block_until_ready(metanet_forward(x_big, *params))
    assert out_big.shape == (320, 1), out_big.shape
    assert jnp.allclose(out_big, ref_big, atol=1e-4, rtol=1e-4)

    # --- bf16 MXU operands (f32 accumulation), loosened tolerance -------------
    out_bf16 = jax.block_until_ready(
        metanet_forward(x_big, *params, matmul_dtype=jnp.bfloat16))
    assert out_bf16.shape == (320, 1), out_bf16.shape
    assert float(jnp.max(jnp.abs(out_bf16 - ref_big))) < 0.05

    print("KERNEL_OK")
</pallas_src>

<mosaic_0001>
module attributes {stable_mosaic.version = 11 : i64} {
  func.func @metanet_kernel(%arg0: i32, %arg1: memref<16x13xf32, #tpu.memory_space<vmem>>, %arg2: memref<13x256xf32, #tpu.memory_space<vmem>>, %arg3: memref<1x256xf32, #tpu.memory_space<vmem>>, %arg4: memref<256x128xf32, #tpu.memory_space<vmem>>, %arg5: memref<1x128xf32, #tpu.memory_space<vmem>>, %arg6: memref<1x128xf32, #tpu.memory_space<vmem>>, %arg7: memref<1xf32, #tpu.memory_space<smem>>, %arg8: memref<1x16xf32, #tpu.memory_space<vmem>>) attributes {dimension_semantics = [#tpu.dimension_semantics<parallel>], iteration_bounds = array<i64: 1>, scalar_prefetch = 0 : i64, scratch_operands = 0 : i64, tpu.core_type = #tpu.core_type<tc>, window_params = [{transform_indices = @transform_0, window_bounds = array<i64: 16, 13>}, {pipeline_mode = #tpu.pipeline_mode<synchronous>, transform_indices = @transform_1, window_bounds = array<i64: 13, 256>}, {pipeline_mode = #tpu.pipeline_mode<synchronous>, transform_indices = @transform_2, window_bounds = array<i64: 1, 256>}, {pipeline_mode = #tpu.pipeline_mode<synchronous>, transform_indices = @transform_3, window_bounds = array<i64: 256, 128>}, {pipeline_mode = #tpu.pipeline_mode<synchronous>, transform_indices = @transform_4, window_bounds = array<i64: 1, 128>}, {pipeline_mode = #tpu.pipeline_mode<synchronous>, transform_indices = @transform_5, window_bounds = array<i64: 1, 128>}, {transform_indices = @transform_6, window_bounds = array<i64: 1>}, {transform_indices = @transform_7, window_bounds = array<i64: 1, 16>}]} {
    %c0 = arith.constant 0 : index
    %c0_0 = arith.constant 0 : index
    %0 = vector.load %arg1[%c0, %c0_0] : memref<16x13xf32, #tpu.memory_space<vmem>>, vector<16x13xf32>
    %c0_1 = arith.constant 0 : index
    %c0_2 = arith.constant 0 : index
    %1 = vector.load %arg2[%c0_1, %c0_2] : memref<13x256xf32, #tpu.memory_space<vmem>>, vector<13x256xf32>
    %cst = arith.constant dense<0.000000e+00> : vector<16x256xf32>
    %2 = tpu.matmul %0, %1, %cst {dimension_numbers = #tpu.dot_dimension_numbers<[1], [0], [0], [1], [0, 0, 1, 1], [], []>} : vector<16x13xf32>, vector<13x256xf32>, vector<16x256xf32> -> vector<16x256xf32>
    %c0_3 = arith.constant 0 : index
    %c0_4 = arith.constant 0 : index
    %3 = vector.load %arg3[%c0_3, %c0_4] : memref<1x256xf32, #tpu.memory_space<vmem>>, vector<1x256xf32>
    %4 = vector.broadcast %3 : vector<1x256xf32> to vector<16x256xf32>
    %5 = arith.addf %2, %4 : vector<16x256xf32>
    %6 = arith.mulf %5, %5 : vector<16x256xf32>
    %7 = arith.mulf %6, %5 : vector<16x256xf32>
    %cst_5 = arith.constant 4.471500e-02 : f32
    %8 = vector.broadcast %cst_5 : f32 to vector<16x256xf32>
    %9 = arith.mulf %8, %7 : vector<16x256xf32>
    %10 = arith.addf %5, %9 : vector<16x256xf32>
    %cst_6 = arith.constant 0.797884583 : f32
    %11 = vector.broadcast %cst_6 : f32 to vector<16x256xf32>
    %12 = arith.mulf %11, %10 : vector<16x256xf32>
    %cst_7 = arith.constant 5.000000e-01 : f32
    %13 = vector.broadcast %cst_7 : f32 to vector<16x256xf32>
    %14 = arith.mulf %13, %5 : vector<16x256xf32>
    %15 = math.tanh %12 : vector<16x256xf32>
    %cst_8 = arith.constant 1.000000e+00 : f32
    %16 = vector.broadcast %cst_8 : f32 to vector<16x256xf32>
    %17 = arith.addf %16, %15 : vector<16x256xf32>
    %18 = arith.mulf %14, %17 : vector<16x256xf32>
    %c0_9 = arith.constant 0 : index
    %c0_10 = arith.constant 0 : index
    %19 = vector.load %arg4[%c0_9, %c0_10] : memref<256x128xf32, #tpu.memory_space<vmem>>, vector<256x128xf32>
    %cst_11 = arith.constant dense<0.000000e+00> : vector<16x128xf32>
    %20 = tpu.matmul %18, %19, %cst_11 {dimension_numbers = #tpu.dot_dimension_numbers<[1], [0], [0], [1], [0, 0, 1, 1], [], []>} : vector<16x256xf32>, vector<256x128xf32>, vector<16x128xf32> -> vector<16x128xf32>
    %c0_12 = arith.constant 0 : index
    %c0_13 = arith.constant 0 : index
    %21 = vector.load %arg5[%c0_12, %c0_13] : memref<1x128xf32, #tpu.memory_space<vmem>>, vector<1x128xf32>
    %22 = vector.broadcast %21 : vector<1x128xf32> to vector<16x128xf32>
    %23 = arith.addf %20, %22 : vector<16x128xf32>
    %24 = arith.mulf %23, %23 : vector<16x128xf32>
    %25 = arith.mulf %24, %23 : vector<16x128xf32>
    %cst_14 = arith.constant 4.471500e-02 : f32
    %26 = vector.broadcast %cst_14 : f32 to vector<16x128xf32>
    %27 = arith.mulf %26, %25 : vector<16x128xf32>
    %28 = arith.addf %23, %27 : vector<16x128xf32>
    %cst_15 = arith.constant 0.797884583 : f32
    %29 = vector.broadcast %cst_15 : f32 to vector<16x128xf32>
    %30 = arith.mulf %29, %28 : vector<16x128xf32>
    %cst_16 = arith.constant 5.000000e-01 : f32
    %31 = vector.broadcast %cst_16 : f32 to vector<16x128xf32>
    %32 = arith.mulf %31, %23 : vector<16x128xf32>
    %33 = math.tanh %30 : vector<16x128xf32>
    %cst_17 = arith.constant 1.000000e+00 : f32
    %34 = vector.broadcast %cst_17 : f32 to vector<16x128xf32>
    %35 = arith.addf %34, %33 : vector<16x128xf32>
    %36 = arith.mulf %32, %35 : vector<16x128xf32>
    %c0_18 = arith.constant 0 : index
    %c0_19 = arith.constant 0 : index
    %37 = vector.load %arg6[%c0_18, %c0_19] : memref<1x128xf32, #tpu.memory_space<vmem>>, vector<1x128xf32>
    %cst_20 = arith.constant dense<0.000000e+00> : vector<1x16xf32>
    %38 = tpu.matmul %37, %36, %cst_20 {dimension_numbers = #tpu.dot_dimension_numbers<[1], [1], [0], [0], [0, 0, 1, 0], [], []>} : vector<1x128xf32>, vector<16x128xf32>, vector<1x16xf32> -> vector<1x16xf32>
    %c0_21 = arith.constant 0 : index
    %39 = memref.load %arg7[%c0_21] : memref<1xf32, #tpu.memory_space<smem>>
    %40 = vector.broadcast %39 : f32 to vector<1x16xf32>
    %41 = arith.addf %38, %40 : vector<1x16xf32>
    %c0_22 = arith.constant 0 : index
    %c0_23 = arith.constant 0 : index
    %42 = vector.load %arg8[%c0_22, %c0_23] : memref<1x16xf32, #tpu.memory_space<vmem>>, vector<1x16xf32>
    tpu.vector_store %arg8[%c0_22, %c0_23], %41 {strides = array<i32>} : memref<1x16xf32, #tpu.memory_space<vmem>>, vector<1x16xf32>,
    return
  }
  func.func @transform_0(%arg0: i32) -> (i32, i32) {
    %c0_i32 = arith.constant 0 : i32
    %c0_i32_0 = arith.constant 0 : i32
    return %arg0, %c0_i32 : i32, i32
  }
  func.func @transform_1(%arg0: i32) -> (i32, i32) {
    %c0_i32 = arith.constant 0 : i32
    %c0_i32_0 = arith.constant 0 : i32
    %c0_i32_1 = arith.constant 0 : i32
    return %c0_i32, %c0_i32_0 : i32, i32
  }
  func.func @transform_2(%arg0: i32) -> (i32, i32) {
    %c0_i32 = arith.constant 0 : i32
    %c0_i32_0 = arith.constant 0 : i32
    %c0_i32_1 = arith.constant 0 : i32
    return %c0_i32, %c0_i32_0 : i32, i32
  }
  func.func @transform_3(%arg0: i32) -> (i32, i32) {
    %c0_i32 = arith.constant 0 : i32
    %c0_i32_0 = arith.constant 0 : i32
    %c0_i32_1 = arith.constant 0 : i32
    return %c0_i32, %c0_i32_0 : i32, i32
  }
  func.func @transform_4(%arg0: i32) -> (i32, i32) {
    %c0_i32 = arith.constant 0 : i32
    %c0_i32_0 = arith.constant 0 : i32
    %c0_i32_1 = arith.constant 0 : i32
    return %c0_i32, %c0_i32_0 : i32, i32
  }
  func.func @transform_5(%arg0: i32) -> (i32, i32) {
    %c0_i32 = arith.constant 0 : i32
    %c0_i32_0 = arith.constant 0 : i32
    %c0_i32_1 = arith.constant 0 : i32
    return %c0_i32, %c0_i32_0 : i32, i32
  }
  func.func @transform_6(%arg0: i32) -> i32 {
    %c0_i32 = arith.constant 0 : i32
    %c0_i32_0 = arith.constant 0 : i32
    return %c0_i32 : i32
  }
  func.func @transform_7(%arg0: i32) -> (i32, i32) {
    %c0_i32 = arith.constant 0 : i32
    %c0_i32_0 = arith.constant 0 : i32
    return %c0_i32, %arg0 : i32, i32
  }
}

</mosaic_0001>

<llo_original>
// kernel: metanet_forward.1
$region0: #{metanet_forward.1}
  #allocation0 [shape = 'u32[]', space=smem, size = 0x4, offset = 0x4, fixed_abs, tag = 'smem constant byte address 0x4 - core index']
  #allocation1 [shape = 'u32[144,128]{1,0:T(1,128)}', space=vmem, size = 0x12000, scoped, tag = 'internal scratch']
  #allocation2 [shape = 'f32[1]{0:T(128)S(6)}', space=smem, size = 0x200, scoped, tag = 'scoped memory for metanet_forward.1']
  %s0 = inlined_call_operand.hbm [shape: f32[16,13], index: 0, kind: input, shape index: {}]
  %s1 = inlined_call_operand.hbm [shape: f32[13,256], index: 1, kind: input, shape index: {}]
  %s2 = inlined_call_operand.vmem [shape: f32[1,256], index: 2, kind: input, shape index: {}]
  %s3 = inlined_call_operand.hbm [shape: f32[256,128], index: 3, kind: input, shape index: {}]
  %s4 = inlined_call_operand.vmem [shape: f32[1,128], index: 4, kind: input, shape index: {}]
  %s5 = inlined_call_operand.vmem [shape: f32[1,128], index: 5, kind: input, shape index: {}]
  %s6 = inlined_call_operand.<no memory space> [shape: f32[1], index: 6, kind: input, shape index: {}]
  %s7 = inlined_call_operand.hbm [shape: f32[1,16], index: 7, kind: output, shape index: {}]
  %s8 = sld [smem:[#allocation0]]
  $region50: #{metanet_forward.1} parent=0
    _
  %s10 = ssub.s32 1, %s8
  %s11 = scalar_select 0, %s10, %s8
  %12 = sst [smem:[#allocation2]] %s6
  $region1: #{metanet_forward.1} parent=0
    #allocation3 [shape = 'u8[8192]{0}', space=vmem, size = 0x2000, scoped, tag = 'input window, operand 0, single buffered']
    #allocation4 [shape = 's32[1]{0}', space=sflag, size = 0x4, scoped, tag = 'scoped memory for metanet_forward.1']
    #allocation5 [shape = 's32[1]{0}', space=sflag, size = 0x4, scoped, tag = 'scoped memory for metanet_forward.1']
    #allocation6 [shape = 'u8[16384]{0}', space=vmem, size = 0x4000, scoped, tag = 'input window, operand 1, single buffered']
    #allocation7 [shape = 's32[1]{0}', space=sflag, size = 0x4, scoped, tag = 'scoped memory for metanet_forward.1']
    #allocation8 [shape = 'u8[131072]{0}', space=vmem, size = 0x20000, scoped, tag = 'input window, operand 3, single buffered']
    #allocation9 [shape = 'u8[512]{0}', space=vmem, size = 0x400, scoped, tag = 'output window, operand 0, single buffered']
    %13 = vsyncpa [#allocation4], 0
    %14 = vsyncpa [#allocation7], 0
    %15 = vsyncpa [#allocation5], 0
    // Predicated region
    $region2: #{metanet_forward.1} parent=1 // pred_check
      _
    $region3: #{metanet_forward.1} parent=1 // pred_check_branch
      %17 = sbr.rel (0) target = $region5
    $region4: #{metanet_forward.1} parent=1 // pred_region
      %s19 = ssub.s32 256, 256
      %20 = vsyncadd [#allocation4], %s19
      %s21 = sshll.u32 [#allocation3], 4
      %s22 = int_to_ptr.vmem [resolvable:$true] %s21
      %27 = dma.hbm_to_vmem [thread:$0]  %s0, 256, %s22, [#allocation4], 128, 128, 8
    $region5: #{metanet_forward.1} parent=1 // pred_fallthru
      _
    // Predicated region
    $region6: #{metanet_forward.1} parent=1 // pred_check
      _
    $region7: #{metanet_forward.1} parent=1 // pred_check_branch
      %29 = sbr.rel (0) target = $region9
    $region8: #{metanet_forward.1} parent=1 // pred_region
      %s31 = ssub.s32 512, 512
      %32 = vsyncadd [#allocation7], %s31
      %s33 = sshll.u32 [#allocation6], 4
      %s34 = int_to_ptr.vmem [resolvable:$true] %s33
      %39 = dma.hbm_to_vmem [thread:$0]  %s1, 512, %s34, [#allocation7], 256, 256, 16
    $region9: #{metanet_forward.1} parent=1 // pred_fallthru
      _
    // Predicated region
    $region10: #{metanet_forward.1} parent=1 // pred_check
      _
    $region11: #{metanet_forward.1} parent=1 // pred_check_branch
      %41 = sbr.rel (0) target = $region13
    $region12: #{metanet_forward.1} parent=1 // pred_region
      _
    $region13: #{metanet_forward.1} parent=1 // pred_fallthru
      _
    // Predicated region
    $region14: #{metanet_forward.1} parent=1 // pred_check
      _
    $region15: #{metanet_forward.1} parent=1 // pred_check_branch
      %43 = sbr.rel (0) target = $region17
    $region16: #{metanet_forward.1} parent=1 // pred_region
      %s45 = ssub.s32 4096, 4096
      %46 = vsyncadd [#allocation7], %s45
      %s47 = sshll.u32 [#allocation8], 4
      %s48 = int_to_ptr.vmem [resolvable:$true] %s47
      %53 = dma.hbm_to_vmem [thread:$0]  %s3, 4096, %s48, [#allocation7], 128, 128, 8
    $region17: #{metanet_forward.1} parent=1 // pred_fallthru
      _
    // Predicated region
    $region18: #{metanet_forward.1} parent=1 // pred_check
      _
    $region19: #{metanet_forward.1} parent=1 // pred_check_branch
      %55 = sbr.rel (0) target = $region21
    $region20: #{metanet_forward.1} parent=1 // pred_region
      _
    $region21: #{metanet_forward.1} parent=1 // pred_fallthru
      _
    // Predicated region
    $region22: #{metanet_forward.1} parent=1 // pred_check
      _
    $region23: #{metanet_forward.1} parent=1 // pred_check_branch
      %57 = sbr.rel (0) target = $region25
    $region24: #{metanet_forward.1} parent=1 // pred_region
      _
    $region25: #{metanet_forward.1} parent=1 // pred_fallthru
      _
    // Predicated region
    $region26: #{metanet_forward.1} parent=1 // pred_check
      _
    $region27: #{metanet_forward.1} parent=1 // pred_check_branch
      %59 = sbr.rel (0) target = $region29
    $region28: #{metanet_forward.1} parent=1 // pred_region
      _
    $region29: #{metanet_forward.1} parent=1 // pred_fallthru
      _
    // Predicated region
    $region30: #{metanet_forward.1} parent=1 // pred_check
      _
    $region31: #{metanet_forward.1} parent=1 // pred_check_branch
      %61 = sbr.rel (0) target = $region33
    $region32: #{metanet_forward.1} parent=1 // pred_region
      %62 = dma.done [#allocation4], 256
    $region33: #{metanet_forward.1} parent=1 // pred_fallthru
      _
    // Predicated region
    $region34: #{metanet_forward.1} parent=1 // pred_check
      _
    $region35: #{metanet_forward.1} parent=1 // pred_check_branch
      %64 = sbr.rel (0) target = $region37
    $region36: #{metanet_forward.1} parent=1 // pred_region
      %65 = dma.done [#allocation7], 512
    $region37: #{metanet_forward.1} parent=1 // pred_fallthru
      _
    // Predicated region
    $region38: #{metanet_forward.1} parent=1 // pred_check
      _
    $region39: #{metanet_forward.1} parent=1 // pred_check_branch
      %67 = sbr.rel (0) target = $region41
    $region40: #{metanet_forward.1} parent=1 // pred_region
      %68 = dma.done [#allocation7], 4096
    $region41: #{metanet_forward.1} parent=1 // pred_fallthru
      _
    %v69 = vld [vmem:[#allocation3] sm:$0xff]
    %v70 = vld [vmem:[#allocation3 + $0x8] sm:$0xff]
    %v71 = vld [vmem:[#allocation6] sm:$0xff]
    %v72 = vld [vmem:[#allocation6 + $0x8] sm:$0xff]
    %v73 = vld [vmem:[#allocation6 + $0x10] sm:$0x1f]
    %v74 = vld [vmem:[#allocation6 + $0x18] sm:$0x1f]
    %v75 = vld [vmem:[%s2] sm:$0x3]
    %v77 = vlaneseq
    %v78 = vshrl.u32 %v77, 7
    %v79 = vsub.s32 0, %v78
    %v80 = vrot.slane %v75, %v79
    %v81 = vlaneseq
    %v82 = vshrl.u32 %v81, 7
    %v83 = vsub.s32 1, %v82
    %v84 = vrot.slane %v75, %v83
    %vm87 = vcmask 105472
    %v89 = vsel %vm87, %v69, 0
    %v92 = vsel %vm87, %v70, 0
    %vm94 = vcmask 1044480
    %v96 = vsel %vm94, %v73, 0
    %v99 = vsel %vm94, %v74, 0
    %101 = vmatprep.subr.mxu0 0.0
    %102 = vmatpush1.msra.mxu0 0.0
    %103 = vmatprep.subr.mxu0 0.0
    %104 = vmatpush1.msra.mxu0 0.0
    %105 = vmatprep.subr.mxu0 0.0
    %106 = vmatpush1.msra.mxu0 0.0
    %107 = vmatprep.subr.mxu0 0.0
    %108 = vmatpush1.msra.mxu0 0.0
    %109 = vmatprep.subr.mxu0 0.0
    %110 = vmatpush1.msra.mxu0 0.0
    %111 = vmatprep.subr.mxu0 0.0
    %112 = vmatpush1.msra.mxu0 0.0
    %113 = vmatprep.subr.mxu0 0.0
    %114 = vmatpush1.msra.mxu0 0.0
    %115 = vmatprep.subr.mxu0 0.0
    %116 = vmatpush1.msra.mxu0 0.0
    %117 = vmatprep.subr.mxu0 0.0
    %118 = vmatpush1.msra.mxu0 0.0
    %119 = vmatprep.subr.mxu0 0.0
    %120 = vmatpush1.msra.mxu0 0.0
    %121 = vmatprep.subr.mxu0 0.0
    %122 = vmatpush1.msra.mxu0 0.0
    %123 = vmatprep.subr.mxu0 0.0
    %124 = vmatpush1.msra.mxu0 0.0
    %125 = vmatprep.subr.mxu0 0.0
    %126 = vmatpush1.msra.mxu0 0.0
    %127 = vmatprep.subr.mxu0 0.0
    %128 = vmatpush1.msra.mxu0 0.0
    %129 = vmatprep.subr.mxu0 %v99
    %130 = vmatpush1.msra.mxu0 %v96
    %131 = vmatprep.subr.mxu0 %v72
    %132 = vmatpush1.msra.mxu0 %v71
    %133 = vmatprep.subr.mxu0 0.0
    %134 = vmatpush2.msra.mxu0 0.0
    %135 = vmatprep.subr.mxu0 0.0
    %136 = vmatpush2.msra.mxu0 0.0
    %137 = vmatprep.subr.mxu0 0.0
    %138 = vmatpush2.msra.mxu0 0.0
    %139 = vmatprep.subr.mxu0 0.0
    %140 = vmatpush2.msra.mxu0 0.0
    %141 = vmatprep.subr.mxu0 0.0
    %142 = vmatpush2.msra.mxu0 0.0
    %143 = vmatprep.subr.mxu0 0.0
    %144 = vmatpush2.msra.mxu0 0.0
    %145 = vmatprep.subr.mxu0 0.0
    %146 = vmatpush2.msra.mxu0 0.0
    %147 = vmatprep.subr.mxu0 0.0
    %148 = vmatpush2.msra.mxu0 0.0
    %149 = vmatprep.subr.mxu0 0.0
    %150 = vmatpush2.msra.mxu0 0.0
    %151 = vmatprep.subr.mxu0 0.0
    %152 = vmatpush2.msra.mxu0 0.0
    %153 = vmatprep.subr.mxu0 0.0
    %154 = vmatpush2.msra.mxu0 0.0
    %155 = vmatprep.subr.mxu0 0.0
    %156 = vmatpush2.msra.mxu0 0.0
    %157 = vmatprep.subr.mxu0 0.0
    %158 = vmatpush2.msra.mxu0 0.0
    %159 = vmatprep.subr.mxu0 0.0
    %160 = vmatpush2.msra.mxu0 0.0
    %161 = vmatprep.subr.mxu0 0.0
    %162 = vmatpush2.msra.mxu0 0.0
    %163 = vmatprep.subr.mxu0 0.0
    %164 = vmatpush2.msra.mxu0 0.0
    %165 = vmatprep.mubr.f32.mxu0 0.0
    %166 = vmatmul.mubr.f32.gmra.mxu0 %v89
    %v167 = vpop.f32.mrf.mxu0
    %v168 = vadd.f32 %v80, %v167
    %v169 = vpop.f32.mrf.mxu0
    %v170 = vadd.f32 %v84, %v169
    %171 = vmatprep.mubr.f32.mxu0 0.0
    %172 = vmatmul.mubr.f32.gmra.mxu0 %v92
    %v173 = vpop.f32.mrf.mxu0
    %v174 = vadd.f32 %v80, %v173
    %v175 = vpop.f32.mrf.mxu0
    %v176 = vadd.f32 %v84, %v175
    %177 = vdwg.mxu0
    %v178 = vmul.f32 %v168, %v168
    %v179 = vmul.f32 %v170, %v170
    %v180 = vmul.f32 %v174, %v174
    %v181 = vmul.f32 %v176, %v176
    %v182 = vmul.f32 %v178, %v168
    %v183 = vmul.f32 %v179, %v170
    %v184 = vmul.f32 %v180, %v174
    %v185 = vmul.f32 %v181, %v176
    %v186 = vmul.f32 %v182, 0.044715
    %v187 = vmul.f32 %v183, 0.044715
    %v188 = vmul.f32 %v184, 0.044715
    %v189 = vmul.f32 %v185, 0.044715
    %v190 = vadd.f32 %v168, %v186
    %v191 = vadd.f32 %v170, %v187
    %v192 = vadd.f32 %v174, %v188
    %v193 = vadd.f32 %v176, %v189
    %v194 = vmul.f32 %v190, 0.7978846
    %v195 = vmul.f32 %v191, 0.7978846
    %v196 = vmul.f32 %v192, 0.7978846
    %v197 = vmul.f32 %v193, 0.7978846
    %v198 = vmul.f32 %v168, 0.5
    %v199 = vmul.f32 %v170, 0.5
    %v200 = vmul.f32 %v174, 0.5
    %v201 = vmul.f32 %v176, 0.5
    %v202 = vtanh.pop %v194
    %v203 = vtanh.pop %v195
    %v204 = vtanh.pop %v196
    %v205 = vtanh.pop %v197
    %v206 = vadd.f32 %v202, 1.0
    %v207 = vadd.f32 %v203, 1.0
    %v208 = vadd.f32 %v204, 1.0
    %v209 = vadd.f32 %v205, 1.0
    %v210 = vmul.f32 %v198, %v206
    %v211 = vmul.f32 %v199, %v207
    %v212 = vmul.f32 %v200, %v208
    %v213 = vmul.f32 %v201, %v209
    %v214 = vld [vmem:[#allocation8] sm:$0xff]
    %v215 = vld [vmem:[#allocation8 + $0x8] sm:$0xff]
    %v216 = vld [vmem:[#allocation8 + $0x10] sm:$0xff]
    %v217 = vld [vmem:[#allocation8 + $0x18] sm:$0xff]
    %v218 = vld [vmem:[#allocation8 + $0x20] sm:$0xff]
    %v219 = vld [vmem:[#allocation8 + $0x28] sm:$0xff]
    %v220 = vld [vmem:[#allocation8 + $0x30] sm:$0xff]
    %v221 = vld [vmem:[#allocation8 + $0x38] sm:$0xff]
    %v222 = vld [vmem:[#allocation8 + $0x40] sm:$0xff]
    %v223 = vld [vmem:[#allocation8 + $0x48] sm:$0xff]
    %v224 = vld [vmem:[#allocation8 + $0x50] sm:$0xff]
    %v225 = vld [vmem:[#allocation8 + $0x58] sm:$0xff]
    %v226 = vld [vmem:[#allocation8 + $0x60] sm:$0xff]
    %v227 = vld [vmem:[#allocation8 + $0x68] sm:$0xff]
    %v228 = vld [vmem:[#allocation8 + $0x70] sm:$0xff]
    %v229 = vld [vmem:[#allocation8 + $0x78] sm:$0xff]
    %v230 = vld [vmem:[#allocation8 + $0x80] sm:$0xff]
    %v231 = vld [vmem:[#allocation8 + $0x88] sm:$0xff]
    %v232 = vld [vmem:[#allocation8 + $0x90] sm:$0xff]
    %v233 = vld [vmem:[#allocation8 + $0x98] sm:$0xff]
    %v234 = vld [vmem:[#allocation8 + $0xa0] sm:$0xff]
    %v235 = vld [vmem:[#allocation8 + $0xa8] sm:$0xff]
    %v236 = vld [vmem:[#allocation8 + $0xb0] sm:$0xff]
    %v237 = vld [vmem:[#allocation8 + $0xb8] sm:$0xff]
    %v238 = vld [vmem:[#allocation8 + $0xc0] sm:$0xff]
    %v239 = vld [vmem:[#allocation8 + $0xc8] sm:$0xff]
    %v240 = vld [vmem:[#allocation8 + $0xd0] sm:$0xff]
    %v241 = vld [vmem:[#allocation8 + $0xd8] sm:$0xff]
    %v242 = vld [vmem:[#allocation8 + $0xe0] sm:$0xff]
    %v243 = vld [vmem:[#allocation8 + $0xe8] sm:$0xff]
    %v244 = vld [vmem:[#allocation8 + $0xf0] sm:$0xff]
    %v245 = vld [vmem:[#allocation8 + $0xf8] sm:$0xff]
    %v246 = vld [vmem:[%s4] sm:$0x1]
    %v248 = vlaneseq
    %v249 = vshrl.u32 %v248, 7
    %v250 = vsub.s32 0, %v249
    %v251 = vrot.slane %v246, %v250
    %253 = vmatprep.subr.mxu0 0.0
    %254 = vmatpush1.msra.mxu0 %v229
    %255 = vmatprep.subr.mxu0 0.0
    %256 = vmatpush1.msra.mxu0 %v228
    %257 = vmatprep.subr.mxu0 0.0
    %258 = vmatpush1.msra.mxu0 %v227
    %259 = vmatprep.subr.mxu0 0.0
    %260 = vmatpush1.msra.mxu0 %v226
    %261 = vmatprep.subr.mxu0 0.0
    %262 = vmatpush1.msra.mxu0 %v225
    %263 = vmatprep.subr.mxu0 0.0
    %264 = vmatpush1.msra.mxu0 %v224
    %265 = vmatprep.subr.mxu0 0.0
    %266 = vmatpush1.msra.mxu0 %v223
    %267 = vmatprep.subr.mxu0 0.0
    %268 = vmatpush1.msra.mxu0 %v222
    %269 = vmatprep.subr.mxu0 0.0
    %270 = vmatpush1.msra.mxu0 %v221
    %271 = vmatprep.subr.mxu0 0.0
    %272 = vmatpush1.msra.mxu0 %v220
    %273 = vmatprep.subr.mxu0 0.0
    %274 = vmatpush1.msra.mxu0 %v219
    %275 = vmatprep.subr.mxu0 0.0
    %276 = vmatpush1.msra.mxu0 %v218
    %277 = vmatprep.subr.mxu0 0.0
    %278 = vmatpush1.msra.mxu0 %v217
    %279 = vmatprep.subr.mxu0 0.0
    %280 = vmatpush1.msra.mxu0 %v216
    %281 = vmatprep.subr.mxu0 0.0
    %282 = vmatpush1.msra.mxu0 %v215
    %283 = vmatprep.subr.mxu0 0.0
    %284 = vmatpush1.msra.mxu0 %v214
    %285 = vmatprep.subr.mxu0 0.0
    %286 = vmatpush2.msra.mxu0 %v245
    %287 = vmatprep.subr.mxu0 0.0
    %288 = vmatpush2.msra.mxu0 %v244
    %289 = vmatprep.subr.mxu0 0.0
    %290 = vmatpush2.msra.mxu0 %v243
    %291 = vmatprep.subr.mxu0 0.0
    %292 = vmatpush2.msra.mxu0 %v242
    %293 = vmatprep.subr.mxu0 0.0
    %294 = vmatpush2.msra.mxu0 %v241
    %295 = vmatprep.subr.mxu0 0.0
    %296 = vmatpush2.msra.mxu0 %v240
    %297 = vmatprep.subr.mxu0 0.0
    %298 = vmatpush2.msra.mxu0 %v239
    %299 = vmatprep.subr.mxu0 0.0
    %300 = vmatpush2.msra.mxu0 %v238
    %301 = vmatprep.subr.mxu0 0.0
    %302 = vmatpush2.msra.mxu0 %v237
    %303 = vmatprep.subr.mxu0 0.0
    %304 = vmatpush2.msra.mxu0 %v236
    %305 = vmatprep.subr.mxu0 0.0
    %306 = vmatpush2.msra.mxu0 %v235
    %307 = vmatprep.subr.mxu0 0.0
    %308 = vmatpush2.msra.mxu0 %v234
    %309 = vmatprep.subr.mxu0 0.0
    %310 = vmatpush2.msra.mxu0 %v233
    %311 = vmatprep.subr.mxu0 0.0
    %312 = vmatpush2.msra.mxu0 %v232
    %313 = vmatprep.subr.mxu0 0.0
    %314 = vmatpush2.msra.mxu0 %v231
    %315 = vmatprep.subr.mxu0 0.0
    %316 = vmatpush2.msra.mxu0 %v230
    %317 = vmatprep.mubr.f32.mxu0 %v211
    %318 = vmatmul.mubr.f32.gmra.mxu0 %v210
    %v319 = vpop.f32.mrf.mxu0
    %v320 = vadd.f32 %v251, %v319
    %v321 = vpop.f32.mrf.mxu0
    %322 = vmatprep.mubr.f32.mxu0 %v213
    %323 = vmatmul.mubr.f32.gmra.mxu0 %v212
    %v324 = vpop.f32.mrf.mxu0
    %v325 = vadd.f32 %v251, %v324
    %v326 = vpop.f32.mrf.mxu0
    %327 = vdwg.mxu0
    %v328 = vmul.f32 %v320, %v320
    %v329 = vmul.f32 %v325, %v325
    %v330 = vmul.f32 %v328, %v320
    %v331 = vmul.f32 %v329, %v325
    %v332 = vmul.f32 %v330, 0.044715
    %v333 = vmul.f32 %v331, 0.044715
    %v334 = vadd.f32 %v320, %v332
    %v335 = vadd.f32 %v325, %v333
    %v336 = vmul.f32 %v334, 0.7978846
    %v337 = vmul.f32 %v335, 0.7978846
    %v338 = vmul.f32 %v320, 0.5
    %v339 = vmul.f32 %v325, 0.5
    %v340 = vtanh.pop %v336
    %v341 = vtanh.pop %v337
    %v342 = vadd.f32 %v340, 1.0
    %v343 = vadd.f32 %v341, 1.0
    %v344 = vmul.f32 %v338, %v342
    %v345 = vmul.f32 %v339, %v343
    %v346 = vld [vmem:[%s5] sm:$0x1]
    %s347 = sld [smem:[#allocation2]]
    %v348 = vstv %s347
    %349 = vmatprep.subr.mxu0 0.0
    %350 = vmatpush1.xpose.msra.mxu0 0.0
    %351 = vmatprep.subr.mxu0 0.0
    %352 = vmatpush1.xpose.msra.mxu0 0.0
    %353 = vmatprep.subr.mxu0 0.0
    %354 = vmatpush1.xpose.msra.mxu0 0.0
    %355 = vmatprep.subr.mxu0 0.0
    %356 = vmatpush1.xpose.msra.mxu0 0.0
    %357 = vmatprep.subr.mxu0 0.0
    %358 = vmatpush1.xpose.msra.mxu0 0.0
    %359 = vmatprep.subr.mxu0 0.0
    %360 = vmatpush1.xpose.msra.mxu0 0.0
    %361 = vmatprep.subr.mxu0 0.0
    %362 = vmatpush1.xpose.msra.mxu0 0.0
    %363 = vmatprep.subr.mxu0 0.0
    %364 = vmatpush1.xpose.msra.mxu0 0.0
    %365 = vmatprep.subr.mxu0 0.0
    %366 = vmatpush1.xpose.msra.mxu0 0.0
    %367 = vmatprep.subr.mxu0 0.0
    %368 = vmatpush1.xpose.msra.mxu0 0.0
    %369 = vmatprep.subr.mxu0 0.0
    %370 = vmatpush1.xpose.msra.mxu0 0.0
    %371 = vmatprep.subr.mxu0 0.0
    %372 = vmatpush1.xpose.msra.mxu0 0.0
    %373 = vmatprep.subr.mxu0 0.0
    %374 = vmatpush1.xpose.msra.mxu0 0.0
    %375 = vmatprep.subr.mxu0 0.0
    %376 = vmatpush1.xpose.msra.mxu0 0.0
    %377 = vmatprep.subr.mxu0 0.0
    %378 = vmatpush1.xpose.msra.mxu0 %v345
    %379 = vmatprep.subr.mxu0 0.0
    %380 = vmatpush1.xpose.msra.mxu0 %v344
    %381 = vmatprep.subr.mxu0 0.0
    %382 = vmatpush2.xpose.msra.mxu0 0.0
    %383 = vmatprep.subr.mxu0 0.0
    %384 = vmatpush2.xpose.msra.mxu0 0.0
    %385 = vmatprep.subr.mxu0 0.0
    %386 = vmatpush2.xpose.msra.mxu0 0.0
    %387 = vmatprep.subr.mxu0 0.0
    %388 = vmatpush2.xpose.msra.mxu0 0.0
    %389 = vmatprep.subr.mxu0 0.0
    %390 = vmatpush2.xpose.msra.mxu0 0.0
    %391 = vmatprep.subr.mxu0 0.0
    %392 = vmatpush2.xpose.msra.mxu0 0.0
    %393 = vmatprep.subr.mxu0 0.0
    %394 = vmatpush2.xpose.msra.mxu0 0.0
    %395 = vmatprep.subr.mxu0 0.0
    %396 = vmatpush2.xpose.msra.mxu0 0.0
    %397 = vmatprep.subr.mxu0 0.0
    %398 = vmatpush2.xpose.msra.mxu0 0.0
    %399 = vmatprep.subr.mxu0 0.0
    %400 = vmatpush2.xpose.msra.mxu0 0.0
    %401 = vmatprep.subr.mxu0 0.0
    %402 = vmatpush2.xpose.msra.mxu0 0.0
    %403 = vmatprep.subr.mxu0 0.0
    %404 = vmatpush2.xpose.msra.mxu0 0.0
    %405 = vmatprep.subr.mxu0 0.0
    %406 = vmatpush2.xpose.msra.mxu0 0.0
    %407 = vmatprep.subr.mxu0 0.0
    %408 = vmatpush2.xpose.msra.mxu0 0.0
    %409 = vmatprep.subr.mxu0 0.0
    %410 = vmatpush2.xpose.msra.mxu0 0.0
    %411 = vmatprep.subr.mxu0 0.0
    %412 = vmatpush2.xpose.msra.mxu0 0.0
    %413 = vmatprep.mubr.f32.mxu0 0.0
    %414 = vmatmul.mubr.f32.gmra.mxu0 %v346
    %v415 = vpop.f32.mrf.mxu0
    %v416 = vadd.f32 %v348, %v415
    %v417 = vpop.f32.mrf.mxu0
    %418 = vdwg.mxu0
    %vm419 = vcmask 122880
    %420 = vst.msk [vmem:[#allocation9] sm:$0x1] %vm419, %v416
    // Predicated region
    $region42: #{metanet_forward.1} parent=1 // pred_check
      _
    $region43: #{metanet_forward.1} parent=1 // pred_check_branch
      %422 = sbr.rel (0) target = $region45
    $region44: #{metanet_forward.1} parent=1 // pred_region
      %s424 = ssub.s32 16, 16
      %425 = vsyncadd [#allocation5], %s424
      %s427 = sshll.u32 [#allocation9], 4
      %s428 = int_to_ptr.vmem [resolvable:$true] %s427
      %430 = dma.vmem_to_hbm [thread:$0]  %s428, 16, %s7, [#allocation5]
    $region45: #{metanet_forward.1} parent=1 // pred_fallthru
      _
    // Predicated region
    $region46: #{metanet_forward.1} parent=1 // pred_check
      _
    $region47: #{metanet_forward.1} parent=1 // pred_check_branch
      %432 = sbr.rel (0) target = $region49
    $region48: #{metanet_forward.1} parent=1 // pred_region
      %433 = dma.done [#allocation5], 16
    $region49: #{metanet_forward.1} parent=1 // pred_fallthru
      _
    %434 = vsyncpa [#allocation4], 1
    %435 = vsyncpa [#allocation7], 1
    %436 = vsyncpa [#allocation5], 1

</llo_original>
